<compile_context>
chip_gen: v7x
topology: tpu7x:2x2x1
jax: 0.10.0
libtpu: 0.0.40
codegen_flags: <defaults>
</compile_context>

<pallas_src>
import functools

import jax
import jax.numpy as jnp
from jax import lax
from jax.experimental import pallas as pl
from jax.experimental.pallas import tpu as pltpu


def _sigmoid_via_tanh(x):
    # logistic(x) == 0.5*tanh(0.5*x)+0.5 : one EUP push instead of
    # exp + reciprocal; the extra mul/add is free VALU filler.
    return 0.5 * jnp.tanh(0.5 * x) + 0.5


# --------------------------------------------------------------------------
# Kernel 1: hoisted input projection  (T*B, I) @ (I, 4H) + bias
# --------------------------------------------------------------------------
def _input_proj_kernel(x_ref, wih_ref, b_ref, gx_ref):
    acc = jnp.dot(x_ref[...], wih_ref[...], preferred_element_type=jnp.float32)
    gx_ref[...] = (acc + b_ref[...]).astype(gx_ref.dtype)


# --------------------------------------------------------------------------
# Kernel 2: LSTM recurrence over time chunks (serial grid axis)
# --------------------------------------------------------------------------
def _lstm_recurrence_kernel(gx_ref, whh_ref, out_ref, hN_ref, cN_ref,
                            *, hidden, chunk):
    """One grid step == `chunk` LSTM timesteps for one batch shard.

    (h, c) state lives directly in the resident h_n / c_n output blocks
    (constant output index map across the serial time axis -> persist in
    VMEM across grid steps, written back to HBM once per batch shard)."""
    H = hidden

    @pl.when(pl.program_id(1) == 0)
    def _init():
        hN_ref[...] = jnp.zeros_like(hN_ref)
        cN_ref[...] = jnp.zeros_like(cN_ref)

    whh = whh_ref[...]                       # (H, 4H), loaded once per chunk

    # TODO(synk): for B << H, drive the MXU weight-stationary
    # (pltpu.matmul_push_rhs once per chunk, matmul_acc_lhs / matmul_pop per
    # timestep tiled over 4H) to amortize the weight push across the chunk;
    # kept as plain jnp.dot here for robustness.
    def step(t, carry):
        h, c = carry                         # f32 (Bs, H)
        # gates = precomputed (x_t @ W_ih^T + b)  +  h_{t-1} @ W_hh^T
        gates = gx_ref[t].astype(jnp.float32) + jnp.dot(
            h.astype(whh.dtype), whh, preferred_element_type=jnp.float32)
        i_g = _sigmoid_via_tanh(gates[:, 0 * H:1 * H])
        f_g = _sigmoid_via_tanh(gates[:, 1 * H:2 * H])
        g_g = jnp.tanh(gates[:, 2 * H:3 * H])
        o_g = _sigmoid_via_tanh(gates[:, 3 * H:4 * H])
        c_new = f_g * c + i_g * g_g
        h_new = o_g * jnp.tanh(c_new)
        out_ref[t] = h_new.astype(out_ref.dtype)
        return h_new, c_new

    h_f, c_f = lax.fori_loop(0, chunk, step, (hN_ref[...], cN_ref[...]),
                             unroll=True)
    hN_ref[...] = h_f
    cN_ref[...] = c_f


# --------------------------------------------------------------------------
# WeightDrop._setweights(): dropout on the raw recurrent weight (per forward)
# --------------------------------------------------------------------------
def _apply_weight_dropout(key, w_raw, dropout, training, variational):
    p = float(dropout)
    if variational:
        # torch code: per-row mask, F.dropout(mask, p, training=True) always.
        if p <= 0.0:
            return w_raw
        keep = jax.random.bernoulli(key, 1.0 - p, (w_raw.shape[0], 1))
        return w_raw * keep.astype(w_raw.dtype) / (1.0 - p)   # unguarded p->1, like PyTorch
    if (not training) or p <= 0.0:
        return w_raw
    keep = jax.random.bernoulli(key, 1.0 - p, w_raw.shape)
    return w_raw * keep.astype(w_raw.dtype) / (1.0 - p)


# --------------------------------------------------------------------------
# Wrapper: WeightDrop(nn.LSTM(I, H), ['weight_hh_l0'], dropout).forward(x)
# --------------------------------------------------------------------------
def weight_drop_lstm(x, w_ih, w_hh_raw, b_ih, b_hh, *,
                     dropout=0.5, training=True, variational=False,
                     rng_key=None, time_chunk=16, compute_dtype=jnp.float32,
                     out_dtype=None, batch_shards=1):
    """Returns (outputs (T,B,H), (h_n, c_n)).

    compute_dtype=jnp.bfloat16 halves the gx HBM stream and feeds the MXU
    natively on v6e/v7x; gate math / h,c carry stay f32.  out_dtype controls
    the (T,B,H) writeback dtype.  batch_shards>1 adds a leading "parallel"
    grid axis over batch halves (useful on v7x when B is large)."""
    x = jnp.asarray(x, jnp.float32)
    T, B, I = x.shape
    H4, H = w_hh_raw.shape
    assert H4 == 4 * H and w_ih.shape == (H4, I)
    assert B % batch_shards == 0
    out_dtype = jnp.float32 if out_dtype is None else out_dtype

    if rng_key is None:
        rng_key = jax.random.PRNGKey(0)

    # ---- weight dropout (once per forward, matching _setweights) ----------
    w_hh = _apply_weight_dropout(rng_key, jnp.asarray(w_hh_raw, jnp.float32),
                                 dropout, training, variational)

    # ---- pre-transpose weights to (K, 4H) for lane-dense (B,K)@(K,4H) dots -
    wih_t = jnp.asarray(w_ih, jnp.float32).T.astype(compute_dtype)   # (I, 4H)
    whh_t = w_hh.T.astype(compute_dtype)                             # (H, 4H)
    bias = (jnp.asarray(b_ih, jnp.float32)
            + jnp.asarray(b_hh, jnp.float32)).reshape(1, H4)

    # ---- 1) hoisted input projection: one big MXU matmul -------------------
    M = T * B
    x2 = x.reshape(M, I).astype(compute_dtype)
    # bm capped at 256: at realistic AWD-LSTM sizes (4H ~ 4608) larger tiles
    # overshoot v7x's 32 MiB scoped-VMEM default once double-buffered.
    bm = M
    for cand in (256, 128, 64, 32, 16, 8):
        if M % cand == 0:
            bm = cand
            break
    gx = pl.pallas_call(
        _input_proj_kernel,
        out_shape=jax.ShapeDtypeStruct((M, H4), compute_dtype),
        grid_spec=pltpu.PrefetchScalarGridSpec(
            num_scalar_prefetch=0,
            grid=(M // bm,),
            in_specs=[
                pl.BlockSpec((bm, I), lambda m: (m, 0)),          # x rows
                pl.BlockSpec((I, H4), lambda m: (0, 0),
                             pipeline_mode=pl.Buffered(1)),        # W_ih^T (resident)
                pl.BlockSpec((1, H4), lambda m: (0, 0),
                             pipeline_mode=pl.Buffered(1)),        # bias (resident)
            ],
            out_specs=pl.BlockSpec((bm, H4), lambda m: (m, 0)),
        ),
        compiler_params=pltpu.CompilerParams(
            dimension_semantics=("parallel",)),
    )(x2, wih_t, bias)
    gx = gx.reshape(T, B, H4)

    # ---- 2) sequential recurrence over time chunks --------------------------
    tc = max(1, min(int(time_chunk), T))
    while T % tc:          # largest chunk size that divides T
        tc -= 1
    ns = int(batch_shards)
    Bs = B // ns
    kernel = functools.partial(_lstm_recurrence_kernel, hidden=H, chunk=tc)
    out, h_n, c_n = pl.pallas_call(
        kernel,
        out_shape=(
            jax.ShapeDtypeStruct((T, B, H), out_dtype),
            jax.ShapeDtypeStruct((B, H), jnp.float32),
            jax.ShapeDtypeStruct((B, H), jnp.float32),
        ),
        grid_spec=pltpu.PrefetchScalarGridSpec(
            num_scalar_prefetch=0,
            grid=(ns, T // tc),
            in_specs=[
                pl.BlockSpec((tc, Bs, H4), lambda b, i: (i, b, 0)),   # gx chunk
                pl.BlockSpec((H, H4), lambda b, i: (0, 0),
                             pipeline_mode=pl.Buffered(1)),           # dropped W_hh^T
            ],
            out_specs=[
                pl.BlockSpec((tc, Bs, H), lambda b, i: (i, b, 0)),    # hidden states
                pl.BlockSpec((Bs, H), lambda b, i: (b, 0)),           # h_n (resident)
                pl.BlockSpec((Bs, H), lambda b, i: (b, 0)),           # c_n (resident)
            ],
        ),
        compiler_params=pltpu.CompilerParams(
            dimension_semantics=("parallel", "arbitrary")),  # batch || , time serial
    )(gx, whh_t)
    return out, (h_n, c_n)


# --------------------------------------------------------------------------
# Pure-JAX reference (PyTorch gate order) for correctness checking
# --------------------------------------------------------------------------
def _lstm_reference(x, w_ih, w_hh, b_ih, b_hh):
    T, B, _ = x.shape
    H = w_hh.shape[1]
    hp = lax.Precision.HIGHEST
    h = jnp.zeros((B, H), jnp.float32)
    c = jnp.zeros((B, H), jnp.float32)
    outs = []
    for t in range(T):
        gates = (jnp.dot(x[t], w_ih.T, precision=hp)
                 + jnp.dot(h, w_hh.T, precision=hp) + b_ih + b_hh)
        i = jax.nn.sigmoid(gates[:, :H])
        f = jax.nn.sigmoid(gates[:, H:2 * H])
        g = jnp.tanh(gates[:, 2 * H:3 * H])
        o = jax.nn.sigmoid(gates[:, 3 * H:])
        c = f * c + i * g
        h = o * jnp.tanh(c)
        outs.append(h)
    return jnp.stack(outs), h, c


if __name__ == "__main__":
    # H multiple of 128 so gate slices / matmul N-dim are lane-aligned;
    # B=16 so a 2-way batch shard keeps 8-aligned sublane blocks.
    T, B, I, H = 8, 16, 64, 128
    key = jax.random.PRNGKey(0)
    k0, k1, k2, k3, k4, k5 = jax.random.split(key, 6)
    bound = 1.0 / jnp.sqrt(H)
    x = jax.random.normal(k0, (T, B, I), jnp.float32)
    w_ih = jax.random.uniform(k1, (4 * H, I), jnp.float32, -bound, bound)
    w_hh_raw = jax.random.uniform(k2, (4 * H, H), jnp.float32, -bound, bound)
    b_ih = jax.random.uniform(k3, (4 * H,), jnp.float32, -bound, bound)
    b_hh = jax.random.uniform(k4, (4 * H,), jnp.float32, -bound, bound)

    ref_out, ref_h, ref_c = _lstm_reference(x, w_ih, w_hh_raw, b_ih, b_hh)

    # 1) LSTM math with dropout disabled == the wrapped nn.LSTM.
    out0, (h0, c0) = weight_drop_lstm(x, w_ih, w_hh_raw, b_ih, b_hh,
                                      dropout=0.0, training=True,
                                      rng_key=k5, time_chunk=4)
    jax.block_until_ready(out0)
    assert jnp.allclose(out0, ref_out, atol=1e-3, rtol=1e-3)
    assert jnp.allclose(h0, ref_h, atol=1e-3, rtol=1e-3)
    assert jnp.allclose(c0, ref_c, atol=1e-3, rtol=1e-3)

    # 1b) Same, but with the batch sharded over two "parallel" grid slots
    #     (v7x second-TC path) — must match the reference exactly too.
    out0b, (h0b, c0b) = weight_drop_lstm(x, w_ih, w_hh_raw, b_ih, b_hh,
                                         dropout=0.0, training=True,
                                         rng_key=k5, time_chunk=4,
                                         batch_shards=2)
    jax.block_until_ready(out0b)
    assert jnp.allclose(out0b, ref_out, atol=1e-3, rtol=1e-3)
    assert jnp.allclose(h0b, ref_h, atol=1e-3, rtol=1e-3)
    assert jnp.allclose(c0b, ref_c, atol=1e-3, rtol=1e-3)

    # 2) WeightDrop with dropout=0.5: must equal an LSTM run with the
    #    identically-dropped W_hh (one mask per forward).
    w_hh_dropped = _apply_weight_dropout(k5, w_hh_raw, 0.5, True, False)
    out1, (h1, c1) = weight_drop_lstm(x, w_ih, w_hh_raw, b_ih, b_hh,
                                      dropout=0.5, training=True,
                                      rng_key=k5, time_chunk=4)
    jax.block_until_ready((out1, h1, c1))
    ref1_out, ref1_h, ref1_c = _lstm_reference(x, w_ih, w_hh_dropped, b_ih, b_hh)
    assert out1.shape == (T, B, H) and h1.shape == (B, H) and c1.shape == (B, H)
    assert jnp.allclose(out1, ref1_out, atol=1e-3, rtol=1e-3)
    assert jnp.allclose(h1, ref1_h, atol=1e-3, rtol=1e-3)
    assert bool(jnp.all(jnp.isfinite(out1)))

    # 3) Variational (per-row mask) + bf16 compute / bf16 gx / bf16 out,
    #    batch sharded — the v6e/v7x training configuration.  bf16 h is
    #    re-quantized every step, so only shape/finiteness is asserted.
    out2, (h2, c2) = weight_drop_lstm(x, w_ih, w_hh_raw, b_ih, b_hh,
                                      dropout=0.5, training=True,
                                      variational=True, rng_key=k5,
                                      time_chunk=4, compute_dtype=jnp.bfloat16,
                                      out_dtype=jnp.bfloat16, batch_shards=2)
    jax.block_until_ready((out2, h2, c2))
    assert out2.shape == (T, B, H) and out2.dtype == jnp.bfloat16
    assert bool(jnp.all(jnp.isfinite(out2.astype(jnp.float32))))

    print("KERNEL_OK")
</pallas_src>

<mosaic_0001>
module attributes {stable_mosaic.version = 11 : i64} {
  func.func @_input_proj_kernel(%arg0: i32, %arg1: memref<128x64xf32, #tpu.memory_space<vmem>>, %arg2: memref<64x512xf32, #tpu.memory_space<vmem>>, %arg3: memref<1x512xf32, #tpu.memory_space<vmem>>, %arg4: memref<128x512xf32, #tpu.memory_space<vmem>>) attributes {dimension_semantics = [#tpu.dimension_semantics<parallel>], iteration_bounds = array<i64: 1>, scalar_prefetch = 0 : i64, scratch_operands = 0 : i64, tpu.core_type = #tpu.core_type<tc>, window_params = [{transform_indices = @transform_0, window_bounds = array<i64: 128, 64>}, {pipeline_mode = #tpu.pipeline_mode<synchronous>, transform_indices = @transform_1, window_bounds = array<i64: 64, 512>}, {pipeline_mode = #tpu.pipeline_mode<synchronous>, transform_indices = @transform_2, window_bounds = array<i64: 1, 512>}, {transform_indices = @transform_3, window_bounds = array<i64: 128, 512>}]} {
    %c0 = arith.constant 0 : index
    %c0_0 = arith.constant 0 : index
    %0 = vector.load %arg1[%c0, %c0_0] : memref<128x64xf32, #tpu.memory_space<vmem>>, vector<128x64xf32>
    %c0_1 = arith.constant 0 : index
    %c0_2 = arith.constant 0 : index
    %1 = vector.load %arg2[%c0_1, %c0_2] : memref<64x512xf32, #tpu.memory_space<vmem>>, vector<64x512xf32>
    %cst = arith.constant dense<0.000000e+00> : vector<128x512xf32>
    %2 = tpu.matmul %0, %1, %cst {dimension_numbers = #tpu.dot_dimension_numbers<[1], [0], [0], [1], [0, 0, 1, 1], [], []>} : vector<128x64xf32>, vector<64x512xf32>, vector<128x512xf32> -> vector<128x512xf32>
    %c0_3 = arith.constant 0 : index
    %c0_4 = arith.constant 0 : index
    %3 = vector.load %arg3[%c0_3, %c0_4] : memref<1x512xf32, #tpu.memory_space<vmem>>, vector<1x512xf32>
    %4 = vector.broadcast %3 : vector<1x512xf32> to vector<128x512xf32>
    %5 = arith.addf %2, %4 : vector<128x512xf32>
    %c0_5 = arith.constant 0 : index
    %c0_6 = arith.constant 0 : index
    %6 = vector.load %arg4[%c0_5, %c0_6] : memref<128x512xf32, #tpu.memory_space<vmem>>, vector<128x512xf32>
    tpu.vector_store %arg4[%c0_5, %c0_6], %5 {strides = array<i32>} : memref<128x512xf32, #tpu.memory_space<vmem>>, vector<128x512xf32>,
    return
  }
  func.func @transform_0(%arg0: i32) -> (i32, i32) {
    %c0_i32 = arith.constant 0 : i32
    %c0_i32_0 = arith.constant 0 : i32
    return %arg0, %c0_i32 : i32, i32
  }
  func.func @transform_1(%arg0: i32) -> (i32, i32) {
    %c0_i32 = arith.constant 0 : i32
    %c0_i32_0 = arith.constant 0 : i32
    %c0_i32_1 = arith.constant 0 : i32
    return %c0_i32, %c0_i32_0 : i32, i32
  }
  func.func @transform_2(%arg0: i32) -> (i32, i32) {
    %c0_i32 = arith.constant 0 : i32
    %c0_i32_0 = arith.constant 0 : i32
    %c0_i32_1 = arith.constant 0 : i32
    return %c0_i32, %c0_i32_0 : i32, i32
  }
  func.func @transform_3(%arg0: i32) -> (i32, i32) {
    %c0_i32 = arith.constant 0 : i32
    %c0_i32_0 = arith.constant 0 : i32
    return %arg0, %c0_i32 : i32, i32
  }
}

</mosaic_0001>

<llo_original>
// kernel: tpu_custom_call.1
$region0: #{tpu_custom_call.1}
  #allocation0 [shape = 'u32[]', space=smem, size = 0x4, offset = 0x4, fixed_abs, tag = 'smem constant byte address 0x4 - core index']
  #allocation1 [shape = 'u32[144,128]{1,0:T(1,128)}', space=vmem, size = 0x12000, scoped, tag = 'internal scratch']
  %s0 = inlined_call_operand.vmem [shape: f32[128,64], index: 0, kind: input, shape index: {}]
  %s1 = inlined_call_operand.hbm [shape: f32[64,512], index: 1, kind: input, shape index: {}]
  %s2 = inlined_call_operand.vmem [shape: f32[1,512], index: 2, kind: input, shape index: {}]
  %s3 = inlined_call_operand.hbm [shape: f32[128,512], index: 3, kind: output, shape index: {}]
  %s4 = sld [smem:[#allocation0]]
  $region26: #{tpu_custom_call.1} parent=0
    _
  %s6 = ssub.s32 1, %s4
  %s7 = scalar_select 0, %s6, %s4
  $region1: #{tpu_custom_call.1} parent=0
    #allocation2 [shape = 'u8[131072]{0}', space=vmem, size = 0x20000, scoped, tag = 'input window, operand 1, single buffered']
    #allocation3 [shape = 's32[1]{0}', space=sflag, size = 0x4, scoped, tag = 'scoped memory for tpu_custom_call.1']
    #allocation4 [shape = 's32[1]{0}', space=sflag, size = 0x4, scoped, tag = 'scoped memory for tpu_custom_call.1']
    #allocation5 [shape = 'u8[262144]{0}', space=vmem, size = 0x40000, scoped, tag = 'output window, operand 0, single buffered']
    %8 = vsyncpa [#allocation3], 0
    %9 = vsyncpa [#allocation4], 0
    // Predicated region
    $region2: #{tpu_custom_call.1} parent=1 // pred_check
      _
    $region3: #{tpu_custom_call.1} parent=1 // pred_check_branch
      %11 = sbr.rel (0) target = $region5
    $region4: #{tpu_custom_call.1} parent=1 // pred_region
      _
    $region5: #{tpu_custom_call.1} parent=1 // pred_fallthru
      _
    // Predicated region
    $region6: #{tpu_custom_call.1} parent=1 // pred_check
      _
    $region7: #{tpu_custom_call.1} parent=1 // pred_check_branch
      %13 = sbr.rel (0) target = $region9
    $region8: #{tpu_custom_call.1} parent=1 // pred_region
      %s15 = ssub.s32 4096, 4096
      %16 = vsyncadd [#allocation3], %s15
      %s17 = sshll.u32 [#allocation2], 4
      %s18 = int_to_ptr.vmem [resolvable:$true] %s17
      %23 = dma.hbm_to_vmem [thread:$0]  %s1, 4096, %s18, [#allocation3], 512, 512, 32
    $region9: #{tpu_custom_call.1} parent=1 // pred_fallthru
      _
    // Predicated region
    $region10: #{tpu_custom_call.1} parent=1 // pred_check
      _
    $region11: #{tpu_custom_call.1} parent=1 // pred_check_branch
      %25 = sbr.rel (0) target = $region13
    $region12: #{tpu_custom_call.1} parent=1 // pred_region
      _
    $region13: #{tpu_custom_call.1} parent=1 // pred_fallthru
      _
    // Predicated region
    $region14: #{tpu_custom_call.1} parent=1 // pred_check
      _
    $region15: #{tpu_custom_call.1} parent=1 // pred_check_branch
      %27 = sbr.rel (0) target = $region17
    $region16: #{tpu_custom_call.1} parent=1 // pred_region
      %28 = dma.done [#allocation3], 4096
    $region17: #{tpu_custom_call.1} parent=1 // pred_fallthru
      _
    %v29 = vld [vmem:[%s0] sm:$0xff]
    %v30 = vld [vmem:[%s0 + $0x8] sm:$0xff]
    %v31 = vld [vmem:[%s0 + $0x10] sm:$0xff]
    %v32 = vld [vmem:[%s0 + $0x18] sm:$0xff]
    %v33 = vld [vmem:[%s0 + $0x20] sm:$0xff]
    %v34 = vld [vmem:[%s0 + $0x28] sm:$0xff]
    %v35 = vld [vmem:[%s0 + $0x30] sm:$0xff]
    %v36 = vld [vmem:[%s0 + $0x38] sm:$0xff]
    %v37 = vld [vmem:[%s0 + $0x40] sm:$0xff]
    %v38 = vld [vmem:[%s0 + $0x48] sm:$0xff]
    %v39 = vld [vmem:[%s0 + $0x50] sm:$0xff]
    %v40 = vld [vmem:[%s0 + $0x58] sm:$0xff]
    %v41 = vld [vmem:[%s0 + $0x60] sm:$0xff]
    %v42 = vld [vmem:[%s0 + $0x68] sm:$0xff]
    %v43 = vld [vmem:[%s0 + $0x70] sm:$0xff]
    %v44 = vld [vmem:[%s0 + $0x78] sm:$0xff]
    %v45 = vld [vmem:[#allocation2] sm:$0xff]
    %v46 = vld [vmem:[#allocation2 + $0x8] sm:$0xff]
    %v47 = vld [vmem:[#allocation2 + $0x10] sm:$0xff]
    %v48 = vld [vmem:[#allocation2 + $0x18] sm:$0xff]
    %v49 = vld [vmem:[#allocation2 + $0x20] sm:$0xff]
    %v50 = vld [vmem:[#allocation2 + $0x28] sm:$0xff]
    %v51 = vld [vmem:[#allocation2 + $0x30] sm:$0xff]
    %v52 = vld [vmem:[#allocation2 + $0x38] sm:$0xff]
    %v53 = vld [vmem:[#allocation2 + $0x40] sm:$0xff]
    %v54 = vld [vmem:[#allocation2 + $0x48] sm:$0xff]
    %v55 = vld [vmem:[#allocation2 + $0x50] sm:$0xff]
    %v56 = vld [vmem:[#allocation2 + $0x58] sm:$0xff]
    %v57 = vld [vmem:[#allocation2 + $0x60] sm:$0xff]
    %v58 = vld [vmem:[#allocation2 + $0x68] sm:$0xff]
    %v59 = vld [vmem:[#allocation2 + $0x70] sm:$0xff]
    %v60 = vld [vmem:[#allocation2 + $0x78] sm:$0xff]
    %v61 = vld [vmem:[#allocation2 + $0x80] sm:$0xff]
    %v62 = vld [vmem:[#allocation2 + $0x88] sm:$0xff]
    %v63 = vld [vmem:[#allocation2 + $0x90] sm:$0xff]
    %v64 = vld [vmem:[#allocation2 + $0x98] sm:$0xff]
    %v65 = vld [vmem:[#allocation2 + $0xa0] sm:$0xff]
    %v66 = vld [vmem:[#allocation2 + $0xa8] sm:$0xff]
    %v67 = vld [vmem:[#allocation2 + $0xb0] sm:$0xff]
    %v68 = vld [vmem:[#allocation2 + $0xb8] sm:$0xff]
    %v69 = vld [vmem:[#allocation2 + $0xc0] sm:$0xff]
    %v70 = vld [vmem:[#allocation2 + $0xc8] sm:$0xff]
    %v71 = vld [vmem:[#allocation2 + $0xd0] sm:$0xff]
    %v72 = vld [vmem:[#allocation2 + $0xd8] sm:$0xff]
    %v73 = vld [vmem:[#allocation2 + $0xe0] sm:$0xff]
    %v74 = vld [vmem:[#allocation2 + $0xe8] sm:$0xff]
    %v75 = vld [vmem:[#allocation2 + $0xf0] sm:$0xff]
    %v76 = vld [vmem:[#allocation2 + $0xf8] sm:$0xff]
    %v77 = vld [vmem:[%s2] sm:$0xf]
    %v79 = vlaneseq
    %v80 = vshrl.u32 %v79, 7
    %v81 = vsub.s32 0, %v80
    %v82 = vrot.slane %v77, %v81
    %v83 = vlaneseq
    %v84 = vshrl.u32 %v83, 7
    %v85 = vsub.s32 1, %v84
    %v86 = vrot.slane %v77, %v85
    %v87 = vlaneseq
    %v88 = vshrl.u32 %v87, 7
    %v89 = vsub.s32 2, %v88
    %v90 = vrot.slane %v77, %v89
    %v91 = vlaneseq
    %v92 = vshrl.u32 %v91, 7
    %v93 = vsub.s32 3, %v92
    %v94 = vrot.slane %v77, %v93
    %vm99 = vcmask 523264
    %v101 = vsel %vm99, %v29, 0
    %v104 = vsel %vm99, %v30, 0
    %v107 = vsel %vm99, %v31, 0
    %v110 = vsel %vm99, %v32, 0
    %v113 = vsel %vm99, %v33, 0
    %v116 = vsel %vm99, %v34, 0
    %v119 = vsel %vm99, %v35, 0
    %v122 = vsel %vm99, %v36, 0
    %v125 = vsel %vm99, %v37, 0
    %v128 = vsel %vm99, %v38, 0
    %v131 = vsel %vm99, %v39, 0
    %v134 = vsel %vm99, %v40, 0
    %v137 = vsel %vm99, %v41, 0
    %v140 = vsel %vm99, %v42, 0
    %v143 = vsel %vm99, %v43, 0
    %v146 = vsel %vm99, %v44, 0
    %148 = vmatprep.subr.mxu0 %v46
    %149 = vmatpush1.msra.mxu0 %v45
    %150 = vmatprep.subr.mxu0 %v50
    %151 = vmatpush1.msra.mxu0 %v49
    %152 = vmatprep.subr.mxu0 %v54
    %153 = vmatpush1.msra.mxu0 %v53
    %154 = vmatprep.subr.mxu0 %v58
    %155 = vmatpush1.msra.mxu0 %v57
    %156 = vmatprep.subr.mxu0 %v62
    %157 = vmatpush1.msra.mxu0 %v61
    %158 = vmatprep.subr.mxu0 %v66
    %159 = vmatpush1.msra.mxu0 %v65
    %160 = vmatprep.subr.mxu0 %v70
    %161 = vmatpush1.msra.mxu0 %v69
    %162 = vmatprep.subr.mxu0 %v74
    %163 = vmatpush1.msra.mxu0 %v73
    %164 = vmatprep.subr.mxu0 0.0
    %165 = vmatpush1.msra.mxu0 0.0
    %166 = vmatprep.subr.mxu0 0.0
    %167 = vmatpush1.msra.mxu0 0.0
    %168 = vmatprep.subr.mxu0 0.0
    %169 = vmatpush1.msra.mxu0 0.0
    %170 = vmatprep.subr.mxu0 0.0
    %171 = vmatpush1.msra.mxu0 0.0
    %172 = vmatprep.subr.mxu0 0.0
    %173 = vmatpush1.msra.mxu0 0.0
    %174 = vmatprep.subr.mxu0 0.0
    %175 = vmatpush1.msra.mxu0 0.0
    %176 = vmatprep.subr.mxu0 0.0
    %177 = vmatpush1.msra.mxu0 0.0
    %178 = vmatprep.subr.mxu0 0.0
    %179 = vmatpush1.msra.mxu0 0.0
    %180 = vmatprep.subr.mxu0 0.0
    %181 = vmatpush1.msra.mxu0 0.0
    %182 = vmatprep.subr.mxu0 0.0
    %183 = vmatpush1.msra.mxu0 0.0
    %184 = vmatprep.subr.mxu0 0.0
    %185 = vmatpush1.msra.mxu0 0.0
    %186 = vmatprep.subr.mxu0 0.0
    %187 = vmatpush1.msra.mxu0 0.0
    %188 = vmatprep.subr.mxu0 0.0
    %189 = vmatpush1.msra.mxu0 0.0
    %190 = vmatprep.subr.mxu0 0.0
    %191 = vmatpush1.msra.mxu0 0.0
    %192 = vmatprep.subr.mxu0 0.0
    %193 = vmatpush1.msra.mxu0 0.0
    %194 = vmatprep.subr.mxu0 0.0
    %195 = vmatpush1.msra.mxu0 0.0
    %196 = vmatprep.subr.mxu0 0.0
    %197 = vmatpush1.msra.mxu0 0.0
    %198 = vmatprep.subr.mxu0 0.0
    %199 = vmatpush1.msra.mxu0 0.0
    %200 = vmatprep.subr.mxu0 0.0
    %201 = vmatpush1.msra.mxu0 0.0
    %202 = vmatprep.subr.mxu0 0.0
    %203 = vmatpush1.msra.mxu0 0.0
    %204 = vmatprep.subr.mxu0 0.0
    %205 = vmatpush1.msra.mxu0 0.0
    %206 = vmatprep.subr.mxu0 0.0
    %207 = vmatpush1.msra.mxu0 0.0
    %208 = vmatprep.subr.mxu0 0.0
    %209 = vmatpush1.msra.mxu0 0.0
    %210 = vmatprep.subr.mxu0 0.0
    %211 = vmatpush1.msra.mxu0 0.0
    %212 = vmatprep.mubr.f32.mxu0 0.0
    %213 = vmatmul.mubr.f32.gmra.mrb[0].mxu0 %v101
    %v214 = vpop.f32.mrb[0].mxu0
    %v215 = vadd.f32 %v82, %v214
    %v216 = vpop.f32.mrb[0].mxu0
    %v217 = vadd.f32 %v86, %v216
    %218 = vmatprep.mubr.f32.mxu0 0.0
    %219 = vmatmul.mubr.f32.gmra.mrb[0].mxu0 %v104
    %v220 = vpop.f32.mrb[0].mxu0
    %v221 = vadd.f32 %v82, %v220
    %v222 = vpop.f32.mrb[0].mxu0
    %v223 = vadd.f32 %v86, %v222
    %224 = vmatprep.mubr.f32.mxu0 0.0
    %225 = vmatmul.mubr.f32.gmra.mrb[0].mxu0 %v107
    %v226 = vpop.f32.mrb[0].mxu0
    %v227 = vadd.f32 %v82, %v226
    %v228 = vpop.f32.mrb[0].mxu0
    %v229 = vadd.f32 %v86, %v228
    %230 = vmatprep.mubr.f32.mxu0 0.0
    %231 = vmatmul.mubr.f32.gmra.mrb[0].mxu0 %v110
    %v232 = vpop.f32.mrb[0].mxu0
    %v233 = vadd.f32 %v82, %v232
    %v234 = vpop.f32.mrb[0].mxu0
    %v235 = vadd.f32 %v86, %v234
    %236 = vmatprep.mubr.f32.mxu0 0.0
    %237 = vmatmul.mubr.f32.gmra.mrb[0].mxu0 %v113
    %v238 = vpop.f32.mrb[0].mxu0
    %v239 = vadd.f32 %v82, %v238
    %v240 = vpop.f32.mrb[0].mxu0
    %v241 = vadd.f32 %v86, %v240
    %242 = vmatprep.mubr.f32.mxu0 0.0
    %243 = vmatmul.mubr.f32.gmra.mrb[0].mxu0 %v116
    %v244 = vpop.f32.mrb[0].mxu0
    %v245 = vadd.f32 %v82, %v244
    %v246 = vpop.f32.mrb[0].mxu0
    %v247 = vadd.f32 %v86, %v246
    %248 = vmatprep.mubr.f32.mxu0 0.0
    %249 = vmatmul.mubr.f32.gmra.mrb[0].mxu0 %v119
    %v250 = vpop.f32.mrb[0].mxu0
    %v251 = vadd.f32 %v82, %v250
    %v252 = vpop.f32.mrb[0].mxu0
    %v253 = vadd.f32 %v86, %v252
    %254 = vmatprep.mubr.f32.mxu0 0.0
    %255 = vmatmul.mubr.f32.gmra.mrb[0].mxu0 %v122
    %v256 = vpop.f32.mrb[0].mxu0
    %v257 = vadd.f32 %v82, %v256
    %v258 = vpop.f32.mrb[0].mxu0
    %v259 = vadd.f32 %v86, %v258
    %260 = vmatprep.mubr.f32.mxu0 0.0
    %261 = vmatmul.mubr.f32.gmra.mrb[0].mxu0 %v125
    %v262 = vpop.f32.mrb[0].mxu0
    %v263 = vadd.f32 %v82, %v262
    %v264 = vpop.f32.mrb[0].mxu0
    %v265 = vadd.f32 %v86, %v264
    %266 = vmatprep.mubr.f32.mxu0 0.0
    %267 = vmatmul.mubr.f32.gmra.mrb[0].mxu0 %v128
    %v268 = vpop.f32.mrb[0].mxu0
    %v269 = vadd.f32 %v82, %v268
    %v270 = vpop.f32.mrb[0].mxu0
    %v271 = vadd.f32 %v86, %v270
    %272 = vmatprep.mubr.f32.mxu0 0.0
    %273 = vmatmul.mubr.f32.gmra.mrb[0].mxu0 %v131
    %v274 = vpop.f32.mrb[0].mxu0
    %v275 = vadd.f32 %v82, %v274
    %v276 = vpop.f32.mrb[0].mxu0
    %v277 = vadd.f32 %v86, %v276
    %278 = vmatprep.mubr.f32.mxu0 0.0
    %279 = vmatmul.mubr.f32.gmra.mrb[0].mxu0 %v134
    %v280 = vpop.f32.mrb[0].mxu0
    %v281 = vadd.f32 %v82, %v280
    %v282 = vpop.f32.mrb[0].mxu0
    %v283 = vadd.f32 %v86, %v282
    %284 = vmatprep.mubr.f32.mxu0 0.0
    %285 = vmatmul.mubr.f32.gmra.mrb[0].mxu0 %v137
    %v286 = vpop.f32.mrb[0].mxu0
    %v287 = vadd.f32 %v82, %v286
    %v288 = vpop.f32.mrb[0].mxu0
    %v289 = vadd.f32 %v86, %v288
    %290 = vmatprep.mubr.f32.mxu0 0.0
    %291 = vmatmul.mubr.f32.gmra.mrb[0].mxu0 %v140
    %v292 = vpop.f32.mrb[0].mxu0
    %v293 = vadd.f32 %v82, %v292
    %v294 = vpop.f32.mrb[0].mxu0
    %v295 = vadd.f32 %v86, %v294
    %296 = vmatprep.mubr.f32.mxu0 0.0
    %297 = vmatmul.mubr.f32.gmra.mrb[0].mxu0 %v143
    %v298 = vpop.f32.mrb[0].mxu0
    %v299 = vadd.f32 %v82, %v298
    %v300 = vpop.f32.mrb[0].mxu0
    %v301 = vadd.f32 %v86, %v300
    %302 = vmatprep.mubr.f32.mxu0 0.0
    %303 = vmatmul.mubr.f32.gmra.mrb[0].mxu0 %v146
    %v304 = vpop.f32.mrb[0].mxu0
    %v305 = vadd.f32 %v82, %v304
    %v306 = vpop.f32.mrb[0].mxu0
    %v307 = vadd.f32 %v86, %v306
    %308 = vdwg.mxu0
    %309 = vmatprep.subr.mxu0 %v48
    %310 = vmatpush1.msra.mxu0 %v47
    %311 = vmatprep.subr.mxu0 %v52
    %312 = vmatpush1.msra.mxu0 %v51
    %313 = vmatprep.subr.mxu0 %v56
    %314 = vmatpush1.msra.mxu0 %v55
    %315 = vmatprep.subr.mxu0 %v60
    %316 = vmatpush1.msra.mxu0 %v59
    %317 = vmatprep.subr.mxu0 %v64
    %318 = vmatpush1.msra.mxu0 %v63
    %319 = vmatprep.subr.mxu0 %v68
    %320 = vmatpush1.msra.mxu0 %v67
    %321 = vmatprep.subr.mxu0 %v72
    %322 = vmatpush1.msra.mxu0 %v71
    %323 = vmatprep.subr.mxu0 %v76
    %324 = vmatpush1.msra.mxu0 %v75
    %325 = vmatprep.subr.mxu0 0.0
    %326 = vmatpush1.msra.mxu0 0.0
    %327 = vmatprep.subr.mxu0 0.0
    %328 = vmatpush1.msra.mxu0 0.0
    %329 = vmatprep.subr.mxu0 0.0
    %330 = vmatpush1.msra.mxu0 0.0
    %331 = vmatprep.subr.mxu0 0.0
    %332 = vmatpush1.msra.mxu0 0.0
    %333 = vmatprep.subr.mxu0 0.0
    %334 = vmatpush1.msra.mxu0 0.0
    %335 = vmatprep.subr.mxu0 0.0
    %336 = vmatpush1.msra.mxu0 0.0
    %337 = vmatprep.subr.mxu0 0.0
    %338 = vmatpush1.msra.mxu0 0.0
    %339 = vmatprep.subr.mxu0 0.0
    %340 = vmatpush1.msra.mxu0 0.0
    %341 = vmatprep.subr.mxu0 0.0
    %342 = vmatpush1.msra.mxu0 0.0
    %343 = vmatprep.subr.mxu0 0.0
    %344 = vmatpush1.msra.mxu0 0.0
    %345 = vmatprep.subr.mxu0 0.0
    %346 = vmatpush1.msra.mxu0 0.0
    %347 = vmatprep.subr.mxu0 0.0
    %348 = vmatpush1.msra.mxu0 0.0
    %349 = vmatprep.subr.mxu0 0.0
    %350 = vmatpush1.msra.mxu0 0.0
    %351 = vmatprep.subr.mxu0 0.0
    %352 = vmatpush1.msra.mxu0 0.0
    %353 = vmatprep.subr.mxu0 0.0
    %354 = vmatpush1.msra.mxu0 0.0
    %355 = vmatprep.subr.mxu0 0.0
    %356 = vmatpush1.msra.mxu0 0.0
    %357 = vmatprep.subr.mxu0 0.0
    %358 = vmatpush1.msra.mxu0 0.0
    %359 = vmatprep.subr.mxu0 0.0
    %360 = vmatpush1.msra.mxu0 0.0
    %361 = vmatprep.subr.mxu0 0.0
    %362 = vmatpush1.msra.mxu0 0.0
    %363 = vmatprep.subr.mxu0 0.0
    %364 = vmatpush1.msra.mxu0 0.0
    %365 = vmatprep.subr.mxu0 0.0
    %366 = vmatpush1.msra.mxu0 0.0
    %367 = vmatprep.subr.mxu0 0.0
    %368 = vmatpush1.msra.mxu0 0.0
    %369 = vmatprep.subr.mxu0 0.0
    %370 = vmatpush1.msra.mxu0 0.0
    %371 = vmatprep.subr.mxu0 0.0
    %372 = vmatpush1.msra.mxu0 0.0
    %373 = vmatprep.mubr.f32.mxu0 0.0
    %374 = vmatmul.mubr.f32.gmra.mrb[0].mxu0 %v101
    %v375 = vpop.f32.mrb[0].mxu0
    %v376 = vadd.f32 %v90, %v375
    %v377 = vpop.f32.mrb[0].mxu0
    %v378 = vadd.f32 %v94, %v377
    %379 = vmatprep.mubr.f32.mxu0 0.0
    %380 = vmatmul.mubr.f32.gmra.mrb[0].mxu0 %v104
    %v381 = vpop.f32.mrb[0].mxu0
    %v382 = vadd.f32 %v90, %v381
    %v383 = vpop.f32.mrb[0].mxu0
    %v384 = vadd.f32 %v94, %v383
    %385 = vmatprep.mubr.f32.mxu0 0.0
    %386 = vmatmul.mubr.f32.gmra.mrb[0].mxu0 %v107
    %v387 = vpop.f32.mrb[0].mxu0
    %v388 = vadd.f32 %v90, %v387
    %v389 = vpop.f32.mrb[0].mxu0
    %v390 = vadd.f32 %v94, %v389
    %391 = vmatprep.mubr.f32.mxu0 0.0
    %392 = vmatmul.mubr.f32.gmra.mrb[0].mxu0 %v110
    %v393 = vpop.f32.mrb[0].mxu0
    %v394 = vadd.f32 %v90, %v393
    %v395 = vpop.f32.mrb[0].mxu0
    %v396 = vadd.f32 %v94, %v395
    %397 = vmatprep.mubr.f32.mxu0 0.0
    %398 = vmatmul.mubr.f32.gmra.mrb[0].mxu0 %v113
    %v399 = vpop.f32.mrb[0].mxu0
    %v400 = vadd.f32 %v90, %v399
    %v401 = vpop.f32.mrb[0].mxu0
    %v402 = vadd.f32 %v94, %v401
    %403 = vmatprep.mubr.f32.mxu0 0.0
    %404 = vmatmul.mubr.f32.gmra.mrb[0].mxu0 %v116
    %v405 = vpop.f32.mrb[0].mxu0
    %v406 = vadd.f32 %v90, %v405
    %v407 = vpop.f32.mrb[0].mxu0
    %v408 = vadd.f32 %v94, %v407
    %409 = vmatprep.mubr.f32.mxu0 0.0
    %410 = vmatmul.mubr.f32.gmra.mrb[0].mxu0 %v119
    %v411 = vpop.f32.mrb[0].mxu0
    %v412 = vadd.f32 %v90, %v411
    %v413 = vpop.f32.mrb[0].mxu0
    %v414 = vadd.f32 %v94, %v413
    %415 = vmatprep.mubr.f32.mxu0 0.0
    %416 = vmatmul.mubr.f32.gmra.mrb[0].mxu0 %v122
    %v417 = vpop.f32.mrb[0].mxu0
    %v418 = vadd.f32 %v90, %v417
    %v419 = vpop.f32.mrb[0].mxu0
    %v420 = vadd.f32 %v94, %v419
    %421 = vmatprep.mubr.f32.mxu0 0.0
    %422 = vmatmul.mubr.f32.gmra.mrb[0].mxu0 %v125
    %v423 = vpop.f32.mrb[0].mxu0
    %v424 = vadd.f32 %v90, %v423
    %v425 = vpop.f32.mrb[0].mxu0
    %v426 = vadd.f32 %v94, %v425
    %427 = vmatprep.mubr.f32.mxu0 0.0
    %428 = vmatmul.mubr.f32.gmra.mrb[0].mxu0 %v128
    %v429 = vpop.f32.mrb[0].mxu0
    %v430 = vadd.f32 %v90, %v429
    %v431 = vpop.f32.mrb[0].mxu0
    %v432 = vadd.f32 %v94, %v431
    %433 = vmatprep.mubr.f32.mxu0 0.0
    %434 = vmatmul.mubr.f32.gmra.mrb[0].mxu0 %v131
    %v435 = vpop.f32.mrb[0].mxu0
    %v436 = vadd.f32 %v90, %v435
    %v437 = vpop.f32.mrb[0].mxu0
    %v438 = vadd.f32 %v94, %v437
    %439 = vmatprep.mubr.f32.mxu0 0.0
    %440 = vmatmul.mubr.f32.gmra.mrb[0].mxu0 %v134
    %v441 = vpop.f32.mrb[0].mxu0
    %v442 = vadd.f32 %v90, %v441
    %v443 = vpop.f32.mrb[0].mxu0
    %v444 = vadd.f32 %v94, %v443
    %445 = vmatprep.mubr.f32.mxu0 0.0
    %446 = vmatmul.mubr.f32.gmra.mrb[0].mxu0 %v137
    %v447 = vpop.f32.mrb[0].mxu0
    %v448 = vadd.f32 %v90, %v447
    %v449 = vpop.f32.mrb[0].mxu0
    %v450 = vadd.f32 %v94, %v449
    %451 = vmatprep.mubr.f32.mxu0 0.0
    %452 = vmatmul.mubr.f32.gmra.mrb[0].mxu0 %v140
    %v453 = vpop.f32.mrb[0].mxu0
    %v454 = vadd.f32 %v90, %v453
    %v455 = vpop.f32.mrb[0].mxu0
    %v456 = vadd.f32 %v94, %v455
    %457 = vmatprep.mubr.f32.mxu0 0.0
    %458 = vmatmul.mubr.f32.gmra.mrb[0].mxu0 %v143
    %v459 = vpop.f32.mrb[0].mxu0
    %v460 = vadd.f32 %v90, %v459
    %v461 = vpop.f32.mrb[0].mxu0
    %v462 = vadd.f32 %v94, %v461
    %463 = vmatprep.mubr.f32.mxu0 0.0
    %464 = vmatmul.mubr.f32.gmra.mrb[0].mxu0 %v146
    %v465 = vpop.f32.mrb[0].mxu0
    %v466 = vadd.f32 %v90, %v465
    %v467 = vpop.f32.mrb[0].mxu0
    %v468 = vadd.f32 %v94, %v467
    %469 = vdwg.mxu0
    %470 = vst [vmem:[#allocation5] sm:$0xff] %v215
    %471 = vst [vmem:[#allocation5 + $0x8] sm:$0xff] %v217
    %472 = vst [vmem:[#allocation5 + $0x10] sm:$0xff] %v376
    %473 = vst [vmem:[#allocation5 + $0x18] sm:$0xff] %v378
    %474 = vst [vmem:[#allocation5 + $0x20] sm:$0xff] %v221
    %475 = vst [vmem:[#allocation5 + $0x28] sm:$0xff] %v223
    %476 = vst [vmem:[#allocation5 + $0x30] sm:$0xff] %v382
    %477 = vst [vmem:[#allocation5 + $0x38] sm:$0xff] %v384
    %478 = vst [vmem:[#allocation5 + $0x40] sm:$0xff] %v227
    %479 = vst [vmem:[#allocation5 + $0x48] sm:$0xff] %v229
    %480 = vst [vmem:[#allocation5 + $0x50] sm:$0xff] %v388
    %481 = vst [vmem:[#allocation5 + $0x58] sm:$0xff] %v390
    %482 = vst [vmem:[#allocation5 + $0x60] sm:$0xff] %v233
    %483 = vst [vmem:[#allocation5 + $0x68] sm:$0xff] %v235
    %484 = vst [vmem:[#allocation5 + $0x70] sm:$0xff] %v394
    %485 = vst [vmem:[#allocation5 + $0x78] sm:$0xff] %v396
    %486 = vst [vmem:[#allocation5 + $0x80] sm:$0xff] %v239
    %487 = vst [vmem:[#allocation5 + $0x88] sm:$0xff] %v241
    %488 = vst [vmem:[#allocation5 + $0x90] sm:$0xff] %v400
    %489 = vst [vmem:[#allocation5 + $0x98] sm:$0xff] %v402
    %490 = vst [vmem:[#allocation5 + $0xa0] sm:$0xff] %v245
    %491 = vst [vmem:[#allocation5 + $0xa8] sm:$0xff] %v247
    %492 = vst [vmem:[#allocation5 + $0xb0] sm:$0xff] %v406
    %493 = vst [vmem:[#allocation5 + $0xb8] sm:$0xff] %v408
    %494 = vst [vmem:[#allocation5 + $0xc0] sm:$0xff] %v251
    %495 = vst [vmem:[#allocation5 + $0xc8] sm:$0xff] %v253
    %496 = vst [vmem:[#allocation5 + $0xd0] sm:$0xff] %v412
    %497 = vst [vmem:[#allocation5 + $0xd8] sm:$0xff] %v414
    %498 = vst [vmem:[#allocation5 + $0xe0] sm:$0xff] %v257
    %499 = vst [vmem:[#allocation5 + $0xe8] sm:$0xff] %v259
    %500 = vst [vmem:[#allocation5 + $0xf0] sm:$0xff] %v418
    %501 = vst [vmem:[#allocation5 + $0xf8] sm:$0xff] %v420
    %502 = vst [vmem:[#allocation5 + $0x100] sm:$0xff] %v263
    %503 = vst [vmem:[#allocation5 + $0x108] sm:$0xff] %v265
    %504 = vst [vmem:[#allocation5 + $0x110] sm:$0xff] %v424
    %505 = vst [vmem:[#allocation5 + $0x118] sm:$0xff] %v426
    %506 = vst [vmem:[#allocation5 + $0x120] sm:$0xff] %v269
    %507 = vst [vmem:[#allocation5 + $0x128] sm:$0xff] %v271
    %508 = vst [vmem:[#allocation5 + $0x130] sm:$0xff] %v430
    %509 = vst [vmem:[#allocation5 + $0x138] sm:$0xff] %v432
    %510 = vst [vmem:[#allocation5 + $0x140] sm:$0xff] %v275
    %511 = vst [vmem:[#allocation5 + $0x148] sm:$0xff] %v277
    %512 = vst [vmem:[#allocation5 + $0x150] sm:$0xff] %v436
    %513 = vst [vmem:[#allocation5 + $0x158] sm:$0xff] %v438
    %514 = vst [vmem:[#allocation5 + $0x160] sm:$0xff] %v281
    %515 = vst [vmem:[#allocation5 + $0x168] sm:$0xff] %v283
    %516 = vst [vmem:[#allocation5 + $0x170] sm:$0xff] %v442
    %517 = vst [vmem:[#allocation5 + $0x178] sm:$0xff] %v444
    %518 = vst [vmem:[#allocation5 + $0x180] sm:$0xff] %v287
    %519 = vst [vmem:[#allocation5 + $0x188] sm:$0xff] %v289
    %520 = vst [vmem:[#allocation5 + $0x190] sm:$0xff] %v448
    %521 = vst [vmem:[#allocation5 + $0x198] sm:$0xff] %v450
    %522 = vst [vmem:[#allocation5 + $0x1a0] sm:$0xff] %v293
    %523 = vst [vmem:[#allocation5 + $0x1a8] sm:$0xff] %v295
    %524 = vst [vmem:[#allocation5 + $0x1b0] sm:$0xff] %v454
    %525 = vst [vmem:[#allocation5 + $0x1b8] sm:$0xff] %v456
    %526 = vst [vmem:[#allocation5 + $0x1c0] sm:$0xff] %v299
    %527 = vst [vmem:[#allocation5 + $0x1c8] sm:$0xff] %v301
    %528 = vst [vmem:[#allocation5 + $0x1d0] sm:$0xff] %v460
    %529 = vst [vmem:[#allocation5 + $0x1d8] sm:$0xff] %v462
    %530 = vst [vmem:[#allocation5 + $0x1e0] sm:$0xff] %v305
    %531 = vst [vmem:[#allocation5 + $0x1e8] sm:$0xff] %v307
    %532 = vst [vmem:[#allocation5 + $0x1f0] sm:$0xff] %v466
    %533 = vst [vmem:[#allocation5 + $0x1f8] sm:$0xff] %v468
    // Predicated region
    $region18: #{tpu_custom_call.1} parent=1 // pred_check
      _
    $region19: #{tpu_custom_call.1} parent=1 // pred_check_branch
      %535 = sbr.rel (0) target = $region21
    $region20: #{tpu_custom_call.1} parent=1 // pred_region
      %s537 = ssub.s32 8192, 8192
      %538 = vsyncadd [#allocation4], %s537
      %s539 = sshll.u32 [#allocation5], 4
      %s540 = int_to_ptr.vmem [resolvable:$true] %s539
      %545 = dma.vmem_to_hbm [thread:$0]  %s540, 8192, %s3, [#allocation4], 512, 512, 32
    $region21: #{tpu_custom_call.1} parent=1 // pred_fallthru
      _
    // Predicated region
    $region22: #{tpu_custom_call.1} parent=1 // pred_check
      _
    $region23: #{tpu_custom_call.1} parent=1 // pred_check_branch
      %547 = sbr.rel (0) target = $region25
    $region24: #{tpu_custom_call.1} parent=1 // pred_region
      %548 = dma.done [#allocation4], 8192
    $region25: #{tpu_custom_call.1} parent=1 // pred_fallthru
      _
    %549 = vsyncpa [#allocation3], 1
    %550 = vsyncpa [#allocation4], 1

</llo_original>
